<compile_context>
chip_gen: v5e
topology: v5e:2x2
jax: 0.10.0
libtpu: 0.0.40
codegen_flags: <defaults>
</compile_context>

<pallas_src>
import functools
import math

import jax
import jax.numpy as jnp
from jax.experimental import pallas as pl
from jax.experimental.pallas import tpu as pltpu


def _round_up(x, m):
    return ((x + m - 1) // m) * m


def _vmem_cap_bytes():
    """~7/8 of physical per-TensorCore VMEM (v5e/v6e: 128 MiB -> ~112 MiB;
    v7x: 64 MiB -> ~56 MiB). Falls back to the conservative v7x size."""
    phys = 64 << 20
    try:
        phys = int(pltpu.get_tpu_info().vmem_capacity_bytes)
    except Exception:
        pass
    return (phys // 8) * 7


# ----------------------------------------------------------------------------
# Path 1: table resident in VMEM, per-row vld gather, dense (8,128) stores.
# ----------------------------------------------------------------------------
def _embedding_gather_kernel(ids_ref, table_ref, out_ref, *, scale, token_tile,
                             fold):
    """One grid step gathers `token_tile` token embeddings.

    ids_ref   : SMEM (T_pad,) int32    -- scalar-prefetched flattened token ids
    table_ref : VMEM (V, D_pad)        -- embedding table (constant block index)
    out_ref   : VMEM (token_tile//fold, fold*D_pad)
                                       -- `fold` tokens packed per 128k-lane row
    """
    step = pl.program_id(0)
    base = step * token_tile
    rows_per_tile = token_tile // fold
    n_blocks = rows_per_tile // 8          # 8 sublanes (one f32 vreg) per store

    def body(blk, carry):
        rows = []
        for r in range(8):                                 # static: 8 sublanes
            tok_base = base + (blk * 8 + r) * fold
            pieces = []
            for j in range(fold):                          # static: lane packing
                tok = ids_ref[tok_base + j]                # scalar id from SMEM
                pieces.append(table_ref[pl.ds(tok, 1), :])   # (1, D_pad) gather
            rows.append(pieces[0] if fold == 1
                        else jnp.concatenate(pieces, axis=-1))
        block = jnp.concatenate(rows, axis=0)              # (8, fold*D_pad)
        row0 = pl.multiple_of(blk * 8, 8)
        # Single unmasked full-vreg store (vs 8 masked 1-sublane stores).
        out_ref[pl.ds(row0, 8), :] = (block * scale).astype(out_ref.dtype)
        return carry

    # Each iteration already covers 8*fold gathers + one dense store; no extra
    # unroll (keeps vreg pressure bounded for large token tiles).
    jax.lax.fori_loop(0, n_blocks, body, 0)


# ----------------------------------------------------------------------------
# Path 2: table resident in HBM, row gather via up-to-`nbuf` outstanding DMAs.
# ----------------------------------------------------------------------------
def _embedding_hbm_gather_kernel(ids_ref, table_hbm, out_ref, rows_buf,
                                 copy_sems, *, scale, token_tile, nbuf):
    """ids_ref: SMEM (T_pad,) int32; table_hbm: HBM (V, D) (pl.ANY);
    out_ref: VMEM (token_tile, D); rows_buf: VMEM scratch (token_tile, D);
    copy_sems: DMA semaphores (nbuf,)."""
    step = pl.program_id(0)
    base = step * token_tile

    def issue(t):
        tok = ids_ref[base + t]
        pltpu.make_async_copy(table_hbm.at[pl.ds(tok, 1), :],
                              rows_buf.at[pl.ds(t, 1), :],
                              copy_sems.at[t % nbuf]).start()

    # Prime `nbuf` outstanding row DMAs.
    for t in range(nbuf):                                  # static
        issue(t)

    def body(t, carry):
        # Wait for row t (descriptor only needs matching shapes).
        pltpu.make_async_copy(table_hbm.at[pl.ds(0, 1), :],
                              rows_buf.at[pl.ds(t, 1), :],
                              copy_sems.at[t % nbuf]).wait()

        @pl.when(t + nbuf < token_tile)
        def _():
            issue(t + nbuf)

        return carry

    jax.lax.fori_loop(0, token_tile, body, 0)
    # All rows landed: one vectorized scale + dense store of the whole tile.
    out_ref[...] = (rows_buf[...] * scale).astype(out_ref.dtype)


# ----------------------------------------------------------------------------
# Wrapper
# ----------------------------------------------------------------------------
def embedding_forward(x, table, *, token_tile=2048, force_hbm=False):
    """x: (B, S) int token ids; table: (V, D). Returns (B, S, D).

    Applies the module's sqrt(d_embed) scaling exactly once (it is part of
    this module's forward, not of nn.Embedding itself).
    """
    B, S = x.shape
    V, D = table.shape
    T = B * S
    scale = float(math.sqrt(D))
    itemsize = table.dtype.itemsize

    # Out-of-range ids are clamped (PyTorch would raise; we can't in-kernel).
    ids = jnp.clip(x.reshape(-1).astype(jnp.int32), 0, V - 1)

    cap = _vmem_cap_bytes()
    headroom = 4 << 20

    # ---- lane-dense output strategy -------------------------------------
    if D % 128 == 0:
        fold, D_pad, table_p = 1, D, table
    elif D < 128 and 128 % D == 0:
        fold, D_pad, table_p = 128 // D, D, table            # pack tokens/lanes
    else:
        # Awkward D (e.g. 96, 160): pad embedding dim to a lane multiple so
        # every store is an unmasked full-lane vst; padding sliced off below.
        fold, D_pad = 1, _round_up(D, 128)
        table_p = jnp.pad(table, ((0, 0), (0, D_pad - D)))

    # Output block sublanes must be a multiple of 8 -> token_tile % (8*fold).
    unit = 8 * fold
    tt = _round_up(min(token_tile, _round_up(T, unit)), unit)
    T_pad = _round_up(T, tt)
    rows_per_tile = tt // fold
    out_tile_bytes = rows_per_tile * fold * D_pad * itemsize
    # VMEM layout pads sublanes to 8 and lanes to 128.
    table_vmem_bytes = _round_up(V, 8) * _round_up(D_pad, 128) * itemsize
    fits_vmem = (table_vmem_bytes + 2 * out_tile_bytes + headroom) <= cap

    if fits_vmem and not force_hbm:
        ids_p = jnp.pad(ids, (0, T_pad - T))       # padded tail gathers row 0

        def run(single_buffer_table):
            tbl_kwargs = ({"pipeline_mode": pl.Buffered(1)}
                          if single_buffer_table else {})
            n_tbl_bufs = 1 if single_buffer_table else 2
            vmem_limit = int(min(n_tbl_bufs * table_vmem_bytes
                                 + 2 * out_tile_bytes + headroom, cap))
            kernel = functools.partial(_embedding_gather_kernel, scale=scale,
                                       token_tile=tt, fold=fold)
            return pl.pallas_call(
                kernel,
                out_shape=jax.ShapeDtypeStruct((T_pad // fold, fold * D_pad),
                                               table.dtype),
                grid_spec=pltpu.PrefetchScalarGridSpec(
                    num_scalar_prefetch=1,
                    grid=(T_pad // tt,),
                    in_specs=[
                        # Full table resident in VMEM; constant block index,
                        # single-buffered when supported.
                        pl.BlockSpec((V, D_pad), lambda i, ids_sref: (0, 0),
                                     **tbl_kwargs),
                    ],
                    out_specs=pl.BlockSpec((rows_per_tile, fold * D_pad),
                                           lambda i, ids_sref: (i, 0)),
                ),
                compiler_params=pltpu.CompilerParams(
                    dimension_semantics=("parallel",),
                    vmem_limit_bytes=vmem_limit,
                ),
            )(ids_p, table_p)

        try:
            out_folded = run(True)     # single-buffer the constant table block
        except Exception:
            out_folded = run(False)    # fallback: pipeline_mode not accepted

        out = out_folded.reshape(T_pad, D_pad)[:T, :D]
        return out.reshape(B, S, D)

    # ---- HBM-resident table: manual row-gather DMAs ----------------------
    tt_h = _round_up(min(min(token_tile, 1024), _round_up(T, 8)), 8)
    T_pad_h = _round_up(T, tt_h)
    ids_h = jnp.pad(ids, (0, T_pad_h - T))
    nbuf = min(8, tt_h)
    tile_bytes = tt_h * D * itemsize
    vmem_limit = int(min(3 * tile_bytes + headroom, cap))

    kernel = functools.partial(_embedding_hbm_gather_kernel, scale=scale,
                               token_tile=tt_h, nbuf=nbuf)
    out_flat = pl.pallas_call(
        kernel,
        out_shape=jax.ShapeDtypeStruct((T_pad_h, D), table.dtype),
        grid_spec=pltpu.PrefetchScalarGridSpec(
            num_scalar_prefetch=1,
            grid=(T_pad_h // tt_h,),
            in_specs=[pl.BlockSpec(memory_space=pl.ANY)],   # table stays in HBM
            out_specs=pl.BlockSpec((tt_h, D), lambda i, ids_sref: (i, 0)),
            scratch_shapes=[
                pltpu.VMEM((tt_h, D), table.dtype),          # DMA landing zone
                pltpu.SemaphoreType.DMA((nbuf,)),
            ],
        ),
        compiler_params=pltpu.CompilerParams(
            dimension_semantics=("parallel",),
            vmem_limit_bytes=vmem_limit,
        ),
    )(ids_h, table)
    return out_flat[:T].reshape(B, S, D)


if __name__ == "__main__":
    # Small deterministic setup consistent with the module: vocab=50,
    # d_embed=32, batch=2, seq=8.
    key = jax.random.PRNGKey(0)
    k_tab, k_ids = jax.random.split(key)

    VOCAB_SIZE = 50
    D_EMBED = 32
    B, S = 2, 8

    table = jax.random.normal(k_tab, (VOCAB_SIZE, D_EMBED), dtype=jnp.float32)
    x = jax.random.randint(k_ids, (B, S), 0, VOCAB_SIZE, dtype=jnp.int32)

    ref = jnp.take(table, x, axis=0) * math.sqrt(D_EMBED)

    # Fast path: VMEM-resident table with dense (8,128) stores.
    out = jax.block_until_ready(embedding_forward(x, table))
    assert out.shape == (B, S, D_EMBED)
    assert jnp.allclose(out, ref, atol=1e-6, rtol=1e-6)

    # Also exercise the HBM-resident-table DMA-gather path (used when the
    # vocabulary does not fit the per-generation VMEM budget).
    out_hbm = jax.block_until_ready(embedding_forward(x, table, force_hbm=True))
    assert jnp.allclose(out_hbm, ref, atol=1e-6, rtol=1e-6)

    print("KERNEL_OK")
</pallas_src>

<mosaic_0001>
module attributes {stable_mosaic.version = 11 : i64} {
  func.func @_embedding_gather_kernel(%arg0: i32, %arg1: memref<32xi32, #tpu.memory_space<smem>>, %arg2: memref<50x32xf32, #tpu.memory_space<vmem>>, %arg3: memref<8x128xf32, #tpu.memory_space<vmem>>) attributes {dimension_semantics = [#tpu.dimension_semantics<parallel>], iteration_bounds = array<i64: 1>, scalar_prefetch = 1 : i64, scratch_operands = 0 : i64, tpu.core_type = #tpu.core_type<tc>, window_params = [{pipeline_mode = #tpu.pipeline_mode<synchronous>, transform_indices = @transform_0, window_bounds = array<i64: 50, 32>}, {transform_indices = @transform_1, window_bounds = array<i64: 8, 128>}]} {
    %c32_i32 = arith.constant 32 : i32
    %0 = arith.muli %arg0, %c32_i32 : i32
    %c0_i32 = arith.constant 0 : i32
    %c8_i32 = arith.constant 8 : i32
    %1 = arith.muli %c0_i32, %c8_i32 : i32
    %c0_i32_0 = arith.constant 0 : i32
    %2 = arith.addi %1, %c0_i32_0 : i32
    %c4_i32 = arith.constant 4 : i32
    %3 = arith.muli %2, %c4_i32 : i32
    %4 = arith.addi %0, %3 : i32
    %c0_i32_1 = arith.constant 0 : i32
    %5 = arith.addi %4, %c0_i32_1 : i32
    %6 = arith.index_cast %5 : i32 to index
    %7 = memref.load %arg1[%6] : memref<32xi32, #tpu.memory_space<smem>>
    %8 = arith.index_cast %7 : i32 to index
    %c0 = arith.constant 0 : index
    %9 = vector.load %arg2[%8, %c0] : memref<50x32xf32, #tpu.memory_space<vmem>>, vector<1x32xf32>
    %c1_i32 = arith.constant 1 : i32
    %10 = arith.addi %4, %c1_i32 : i32
    %11 = arith.index_cast %10 : i32 to index
    %12 = memref.load %arg1[%11] : memref<32xi32, #tpu.memory_space<smem>>
    %13 = arith.index_cast %12 : i32 to index
    %c0_2 = arith.constant 0 : index
    %14 = vector.load %arg2[%13, %c0_2] : memref<50x32xf32, #tpu.memory_space<vmem>>, vector<1x32xf32>
    %c2_i32 = arith.constant 2 : i32
    %15 = arith.addi %4, %c2_i32 : i32
    %16 = arith.index_cast %15 : i32 to index
    %17 = memref.load %arg1[%16] : memref<32xi32, #tpu.memory_space<smem>>
    %18 = arith.index_cast %17 : i32 to index
    %c0_3 = arith.constant 0 : index
    %19 = vector.load %arg2[%18, %c0_3] : memref<50x32xf32, #tpu.memory_space<vmem>>, vector<1x32xf32>
    %c3_i32 = arith.constant 3 : i32
    %20 = arith.addi %4, %c3_i32 : i32
    %21 = arith.index_cast %20 : i32 to index
    %22 = memref.load %arg1[%21] : memref<32xi32, #tpu.memory_space<smem>>
    %23 = arith.index_cast %22 : i32 to index
    %c0_4 = arith.constant 0 : index
    %24 = vector.load %arg2[%23, %c0_4] : memref<50x32xf32, #tpu.memory_space<vmem>>, vector<1x32xf32>
    %25 = tpu.concatenate %9, %14, %19, %24 in 1 : vector<1x32xf32>, vector<1x32xf32>, vector<1x32xf32>, vector<1x32xf32> -> vector<1x128xf32>
    %c8_i32_5 = arith.constant 8 : i32
    %26 = arith.muli %c0_i32, %c8_i32_5 : i32
    %c1_i32_6 = arith.constant 1 : i32
    %27 = arith.addi %26, %c1_i32_6 : i32
    %c4_i32_7 = arith.constant 4 : i32
    %28 = arith.muli %27, %c4_i32_7 : i32
    %29 = arith.addi %0, %28 : i32
    %c0_i32_8 = arith.constant 0 : i32
    %30 = arith.addi %29, %c0_i32_8 : i32
    %31 = arith.index_cast %30 : i32 to index
    %32 = memref.load %arg1[%31] : memref<32xi32, #tpu.memory_space<smem>>
    %33 = arith.index_cast %32 : i32 to index
    %c0_9 = arith.constant 0 : index
    %34 = vector.load %arg2[%33, %c0_9] : memref<50x32xf32, #tpu.memory_space<vmem>>, vector<1x32xf32>
    %c1_i32_10 = arith.constant 1 : i32
    %35 = arith.addi %29, %c1_i32_10 : i32
    %36 = arith.index_cast %35 : i32 to index
    %37 = memref.load %arg1[%36] : memref<32xi32, #tpu.memory_space<smem>>
    %38 = arith.index_cast %37 : i32 to index
    %c0_11 = arith.constant 0 : index
    %39 = vector.load %arg2[%38, %c0_11] : memref<50x32xf32, #tpu.memory_space<vmem>>, vector<1x32xf32>
    %c2_i32_12 = arith.constant 2 : i32
    %40 = arith.addi %29, %c2_i32_12 : i32
    %41 = arith.index_cast %40 : i32 to index
    %42 = memref.load %arg1[%41] : memref<32xi32, #tpu.memory_space<smem>>
    %43 = arith.index_cast %42 : i32 to index
    %c0_13 = arith.constant 0 : index
    %44 = vector.load %arg2[%43, %c0_13] : memref<50x32xf32, #tpu.memory_space<vmem>>, vector<1x32xf32>
    %c3_i32_14 = arith.constant 3 : i32
    %45 = arith.addi %29, %c3_i32_14 : i32
    %46 = arith.index_cast %45 : i32 to index
    %47 = memref.load %arg1[%46] : memref<32xi32, #tpu.memory_space<smem>>
    %48 = arith.index_cast %47 : i32 to index
    %c0_15 = arith.constant 0 : index
    %49 = vector.load %arg2[%48, %c0_15] : memref<50x32xf32, #tpu.memory_space<vmem>>, vector<1x32xf32>
    %50 = tpu.concatenate %34, %39, %44, %49 in 1 : vector<1x32xf32>, vector<1x32xf32>, vector<1x32xf32>, vector<1x32xf32> -> vector<1x128xf32>
    %c8_i32_16 = arith.constant 8 : i32
    %51 = arith.muli %c0_i32, %c8_i32_16 : i32
    %c2_i32_17 = arith.constant 2 : i32
    %52 = arith.addi %51, %c2_i32_17 : i32
    %c4_i32_18 = arith.constant 4 : i32
    %53 = arith.muli %52, %c4_i32_18 : i32
    %54 = arith.addi %0, %53 : i32
    %c0_i32_19 = arith.constant 0 : i32
    %55 = arith.addi %54, %c0_i32_19 : i32
    %56 = arith.index_cast %55 : i32 to index
    %57 = memref.load %arg1[%56] : memref<32xi32, #tpu.memory_space<smem>>
    %58 = arith.index_cast %57 : i32 to index
    %c0_20 = arith.constant 0 : index
    %59 = vector.load %arg2[%58, %c0_20] : memref<50x32xf32, #tpu.memory_space<vmem>>, vector<1x32xf32>
    %c1_i32_21 = arith.constant 1 : i32
    %60 = arith.addi %54, %c1_i32_21 : i32
    %61 = arith.index_cast %60 : i32 to index
    %62 = memref.load %arg1[%61] : memref<32xi32, #tpu.memory_space<smem>>
    %63 = arith.index_cast %62 : i32 to index
    %c0_22 = arith.constant 0 : index
    %64 = vector.load %arg2[%63, %c0_22] : memref<50x32xf32, #tpu.memory_space<vmem>>, vector<1x32xf32>
    %c2_i32_23 = arith.constant 2 : i32
    %65 = arith.addi %54, %c2_i32_23 : i32
    %66 = arith.index_cast %65 : i32 to index
    %67 = memref.load %arg1[%66] : memref<32xi32, #tpu.memory_space<smem>>
    %68 = arith.index_cast %67 : i32 to index
    %c0_24 = arith.constant 0 : index
    %69 = vector.load %arg2[%68, %c0_24] : memref<50x32xf32, #tpu.memory_space<vmem>>, vector<1x32xf32>
    %c3_i32_25 = arith.constant 3 : i32
    %70 = arith.addi %54, %c3_i32_25 : i32
    %71 = arith.index_cast %70 : i32 to index
    %72 = memref.load %arg1[%71] : memref<32xi32, #tpu.memory_space<smem>>
    %73 = arith.index_cast %72 : i32 to index
    %c0_26 = arith.constant 0 : index
    %74 = vector.load %arg2[%73, %c0_26] : memref<50x32xf32, #tpu.memory_space<vmem>>, vector<1x32xf32>
    %75 = tpu.concatenate %59, %64, %69, %74 in 1 : vector<1x32xf32>, vector<1x32xf32>, vector<1x32xf32>, vector<1x32xf32> -> vector<1x128xf32>
    %c8_i32_27 = arith.constant 8 : i32
    %76 = arith.muli %c0_i32, %c8_i32_27 : i32
    %c3_i32_28 = arith.constant 3 : i32
    %77 = arith.addi %76, %c3_i32_28 : i32
    %c4_i32_29 = arith.constant 4 : i32
    %78 = arith.muli %77, %c4_i32_29 : i32
    %79 = arith.addi %0, %78 : i32
    %c0_i32_30 = arith.constant 0 : i32
    %80 = arith.addi %79, %c0_i32_30 : i32
    %81 = arith.index_cast %80 : i32 to index
    %82 = memref.load %arg1[%81] : memref<32xi32, #tpu.memory_space<smem>>
    %83 = arith.index_cast %82 : i32 to index
    %c0_31 = arith.constant 0 : index
    %84 = vector.load %arg2[%83, %c0_31] : memref<50x32xf32, #tpu.memory_space<vmem>>, vector<1x32xf32>
    %c1_i32_32 = arith.constant 1 : i32
    %85 = arith.addi %79, %c1_i32_32 : i32
    %86 = arith.index_cast %85 : i32 to index
    %87 = memref.load %arg1[%86] : memref<32xi32, #tpu.memory_space<smem>>
    %88 = arith.index_cast %87 : i32 to index
    %c0_33 = arith.constant 0 : index
    %89 = vector.load %arg2[%88, %c0_33] : memref<50x32xf32, #tpu.memory_space<vmem>>, vector<1x32xf32>
    %c2_i32_34 = arith.constant 2 : i32
    %90 = arith.addi %79, %c2_i32_34 : i32
    %91 = arith.index_cast %90 : i32 to index
    %92 = memref.load %arg1[%91] : memref<32xi32, #tpu.memory_space<smem>>
    %93 = arith.index_cast %92 : i32 to index
    %c0_35 = arith.constant 0 : index
    %94 = vector.load %arg2[%93, %c0_35] : memref<50x32xf32, #tpu.memory_space<vmem>>, vector<1x32xf32>
    %c3_i32_36 = arith.constant 3 : i32
    %95 = arith.addi %79, %c3_i32_36 : i32
    %96 = arith.index_cast %95 : i32 to index
    %97 = memref.load %arg1[%96] : memref<32xi32, #tpu.memory_space<smem>>
    %98 = arith.index_cast %97 : i32 to index
    %c0_37 = arith.constant 0 : index
    %99 = vector.load %arg2[%98, %c0_37] : memref<50x32xf32, #tpu.memory_space<vmem>>, vector<1x32xf32>
    %100 = tpu.concatenate %84, %89, %94, %99 in 1 : vector<1x32xf32>, vector<1x32xf32>, vector<1x32xf32>, vector<1x32xf32> -> vector<1x128xf32>
    %c8_i32_38 = arith.constant 8 : i32
    %101 = arith.muli %c0_i32, %c8_i32_38 : i32
    %c4_i32_39 = arith.constant 4 : i32
    %102 = arith.addi %101, %c4_i32_39 : i32
    %c4_i32_40 = arith.constant 4 : i32
    %103 = arith.muli %102, %c4_i32_40 : i32
    %104 = arith.addi %0, %103 : i32
    %c0_i32_41 = arith.constant 0 : i32
    %105 = arith.addi %104, %c0_i32_41 : i32
    %106 = arith.index_cast %105 : i32 to index
    %107 = memref.load %arg1[%106] : memref<32xi32, #tpu.memory_space<smem>>
    %108 = arith.index_cast %107 : i32 to index
    %c0_42 = arith.constant 0 : index
    %109 = vector.load %arg2[%108, %c0_42] : memref<50x32xf32, #tpu.memory_space<vmem>>, vector<1x32xf32>
    %c1_i32_43 = arith.constant 1 : i32
    %110 = arith.addi %104, %c1_i32_43 : i32
    %111 = arith.index_cast %110 : i32 to index
    %112 = memref.load %arg1[%111] : memref<32xi32, #tpu.memory_space<smem>>
    %113 = arith.index_cast %112 : i32 to index
    %c0_44 = arith.constant 0 : index
    %114 = vector.load %arg2[%113, %c0_44] : memref<50x32xf32, #tpu.memory_space<vmem>>, vector<1x32xf32>
    %c2_i32_45 = arith.constant 2 : i32
    %115 = arith.addi %104, %c2_i32_45 : i32
    %116 = arith.index_cast %115 : i32 to index
    %117 = memref.load %arg1[%116] : memref<32xi32, #tpu.memory_space<smem>>
    %118 = arith.index_cast %117 : i32 to index
    %c0_46 = arith.constant 0 : index
    %119 = vector.load %arg2[%118, %c0_46] : memref<50x32xf32, #tpu.memory_space<vmem>>, vector<1x32xf32>
    %c3_i32_47 = arith.constant 3 : i32
    %120 = arith.addi %104, %c3_i32_47 : i32
    %121 = arith.index_cast %120 : i32 to index
    %122 = memref.load %arg1[%121] : memref<32xi32, #tpu.memory_space<smem>>
    %123 = arith.index_cast %122 : i32 to index
    %c0_48 = arith.constant 0 : index
    %124 = vector.load %arg2[%123, %c0_48] : memref<50x32xf32, #tpu.memory_space<vmem>>, vector<1x32xf32>
    %125 = tpu.concatenate %109, %114, %119, %124 in 1 : vector<1x32xf32>, vector<1x32xf32>, vector<1x32xf32>, vector<1x32xf32> -> vector<1x128xf32>
    %c8_i32_49 = arith.constant 8 : i32
    %126 = arith.muli %c0_i32, %c8_i32_49 : i32
    %c5_i32 = arith.constant 5 : i32
    %127 = arith.addi %126, %c5_i32 : i32
    %c4_i32_50 = arith.constant 4 : i32
    %128 = arith.muli %127, %c4_i32_50 : i32
    %129 = arith.addi %0, %128 : i32
    %c0_i32_51 = arith.constant 0 : i32
    %130 = arith.addi %129, %c0_i32_51 : i32
    %131 = arith.index_cast %130 : i32 to index
    %132 = memref.load %arg1[%131] : memref<32xi32, #tpu.memory_space<smem>>
    %133 = arith.index_cast %132 : i32 to index
    %c0_52 = arith.constant 0 : index
    %134 = vector.load %arg2[%133, %c0_52] : memref<50x32xf32, #tpu.memory_space<vmem>>, vector<1x32xf32>
    %c1_i32_53 = arith.constant 1 : i32
    %135 = arith.addi %129, %c1_i32_53 : i32
    %136 = arith.index_cast %135 : i32 to index
    %137 = memref.load %arg1[%136] : memref<32xi32, #tpu.memory_space<smem>>
    %138 = arith.index_cast %137 : i32 to index
    %c0_54 = arith.constant 0 : index
    %139 = vector.load %arg2[%138, %c0_54] : memref<50x32xf32, #tpu.memory_space<vmem>>, vector<1x32xf32>
    %c2_i32_55 = arith.constant 2 : i32
    %140 = arith.addi %129, %c2_i32_55 : i32
    %141 = arith.index_cast %140 : i32 to index
    %142 = memref.load %arg1[%141] : memref<32xi32, #tpu.memory_space<smem>>
    %143 = arith.index_cast %142 : i32 to index
    %c0_56 = arith.constant 0 : index
    %144 = vector.load %arg2[%143, %c0_56] : memref<50x32xf32, #tpu.memory_space<vmem>>, vector<1x32xf32>
    %c3_i32_57 = arith.constant 3 : i32
    %145 = arith.addi %129, %c3_i32_57 : i32
    %146 = arith.index_cast %145 : i32 to index
    %147 = memref.load %arg1[%146] : memref<32xi32, #tpu.memory_space<smem>>
    %148 = arith.index_cast %147 : i32 to index
    %c0_58 = arith.constant 0 : index
    %149 = vector.load %arg2[%148, %c0_58] : memref<50x32xf32, #tpu.memory_space<vmem>>, vector<1x32xf32>
    %150 = tpu.concatenate %134, %139, %144, %149 in 1 : vector<1x32xf32>, vector<1x32xf32>, vector<1x32xf32>, vector<1x32xf32> -> vector<1x128xf32>
    %c8_i32_59 = arith.constant 8 : i32
    %151 = arith.muli %c0_i32, %c8_i32_59 : i32
    %c6_i32 = arith.constant 6 : i32
    %152 = arith.addi %151, %c6_i32 : i32
    %c4_i32_60 = arith.constant 4 : i32
    %153 = arith.muli %152, %c4_i32_60 : i32
    %154 = arith.addi %0, %153 : i32
    %c0_i32_61 = arith.constant 0 : i32
    %155 = arith.addi %154, %c0_i32_61 : i32
    %156 = arith.index_cast %155 : i32 to index
    %157 = memref.load %arg1[%156] : memref<32xi32, #tpu.memory_space<smem>>
    %158 = arith.index_cast %157 : i32 to index
    %c0_62 = arith.constant 0 : index
    %159 = vector.load %arg2[%158, %c0_62] : memref<50x32xf32, #tpu.memory_space<vmem>>, vector<1x32xf32>
    %c1_i32_63 = arith.constant 1 : i32
    %160 = arith.addi %154, %c1_i32_63 : i32
    %161 = arith.index_cast %160 : i32 to index
    %162 = memref.load %arg1[%161] : memref<32xi32, #tpu.memory_space<smem>>
    %163 = arith.index_cast %162 : i32 to index
    %c0_64 = arith.constant 0 : index
    %164 = vector.load %arg2[%163, %c0_64] : memref<50x32xf32, #tpu.memory_space<vmem>>, vector<1x32xf32>
    %c2_i32_65 = arith.constant 2 : i32
    %165 = arith.addi %154, %c2_i32_65 : i32
    %166 = arith.index_cast %165 : i32 to index
    %167 = memref.load %arg1[%166] : memref<32xi32, #tpu.memory_space<smem>>
    %168 = arith.index_cast %167 : i32 to index
    %c0_66 = arith.constant 0 : index
    %169 = vector.load %arg2[%168, %c0_66] : memref<50x32xf32, #tpu.memory_space<vmem>>, vector<1x32xf32>
    %c3_i32_67 = arith.constant 3 : i32
    %170 = arith.addi %154, %c3_i32_67 : i32
    %171 = arith.index_cast %170 : i32 to index
    %172 = memref.load %arg1[%171] : memref<32xi32, #tpu.memory_space<smem>>
    %173 = arith.index_cast %172 : i32 to index
    %c0_68 = arith.constant 0 : index
    %174 = vector.load %arg2[%173, %c0_68] : memref<50x32xf32, #tpu.memory_space<vmem>>, vector<1x32xf32>
    %175 = tpu.concatenate %159, %164, %169, %174 in 1 : vector<1x32xf32>, vector<1x32xf32>, vector<1x32xf32>, vector<1x32xf32> -> vector<1x128xf32>
    %c8_i32_69 = arith.constant 8 : i32
    %176 = arith.muli %c0_i32, %c8_i32_69 : i32
    %c7_i32 = arith.constant 7 : i32
    %177 = arith.addi %176, %c7_i32 : i32
    %c4_i32_70 = arith.constant 4 : i32
    %178 = arith.muli %177, %c4_i32_70 : i32
    %179 = arith.addi %0, %178 : i32
    %c0_i32_71 = arith.constant 0 : i32
    %180 = arith.addi %179, %c0_i32_71 : i32
    %181 = arith.index_cast %180 : i32 to index
    %182 = memref.load %arg1[%181] : memref<32xi32, #tpu.memory_space<smem>>
    %183 = arith.index_cast %182 : i32 to index
    %c0_72 = arith.constant 0 : index
    %184 = vector.load %arg2[%183, %c0_72] : memref<50x32xf32, #tpu.memory_space<vmem>>, vector<1x32xf32>
    %c1_i32_73 = arith.constant 1 : i32
    %185 = arith.addi %179, %c1_i32_73 : i32
    %186 = arith.index_cast %185 : i32 to index
    %187 = memref.load %arg1[%186] : memref<32xi32, #tpu.memory_space<smem>>
    %188 = arith.index_cast %187 : i32 to index
    %c0_74 = arith.constant 0 : index
    %189 = vector.load %arg2[%188, %c0_74] : memref<50x32xf32, #tpu.memory_space<vmem>>, vector<1x32xf32>
    %c2_i32_75 = arith.constant 2 : i32
    %190 = arith.addi %179, %c2_i32_75 : i32
    %191 = arith.index_cast %190 : i32 to index
    %192 = memref.load %arg1[%191] : memref<32xi32, #tpu.memory_space<smem>>
    %193 = arith.index_cast %192 : i32 to index
    %c0_76 = arith.constant 0 : index
    %194 = vector.load %arg2[%193, %c0_76] : memref<50x32xf32, #tpu.memory_space<vmem>>, vector<1x32xf32>
    %c3_i32_77 = arith.constant 3 : i32
    %195 = arith.addi %179, %c3_i32_77 : i32
    %196 = arith.index_cast %195 : i32 to index
    %197 = memref.load %arg1[%196] : memref<32xi32, #tpu.memory_space<smem>>
    %198 = arith.index_cast %197 : i32 to index
    %c0_78 = arith.constant 0 : index
    %199 = vector.load %arg2[%198, %c0_78] : memref<50x32xf32, #tpu.memory_space<vmem>>, vector<1x32xf32>
    %200 = tpu.concatenate %184, %189, %194, %199 in 1 : vector<1x32xf32>, vector<1x32xf32>, vector<1x32xf32>, vector<1x32xf32> -> vector<1x128xf32>
    %201 = tpu.concatenate %25, %50, %75, %100, %125, %150, %175, %200 in 0 : vector<1x128xf32>, vector<1x128xf32>, vector<1x128xf32>, vector<1x128xf32>, vector<1x128xf32>, vector<1x128xf32>, vector<1x128xf32>, vector<1x128xf32> -> vector<8x128xf32>
    %c8_i32_79 = arith.constant 8 : i32
    %202 = arith.muli %c0_i32, %c8_i32_79 : i32
    %203 = tpu.assume_multiple %202, 8 : i32
    %cst = arith.constant 5.65685415 : f32
    %204 = vector.broadcast %cst : f32 to vector<8x128xf32>
    %205 = arith.mulf %201, %204 : vector<8x128xf32>
    %206 = arith.index_cast %203 : i32 to index
    %c0_80 = arith.constant 0 : index
    %207 = vector.load %arg3[%206, %c0_80] : memref<8x128xf32, #tpu.memory_space<vmem>>, vector<8x128xf32>
    tpu.vector_store %arg3[%206, %c0_80], %205 {strides = array<i32>} : memref<8x128xf32, #tpu.memory_space<vmem>>, vector<8x128xf32>,
    %c1_i32_81 = arith.constant 1 : i32
    return
  }
  func.func @transform_0(%arg0: i32, %arg1: memref<32xi32, #tpu.memory_space<smem>>) -> (i32, i32) {
    %c0_i32 = arith.constant 0 : i32
    %c0_i32_0 = arith.constant 0 : i32
    %c0_i32_1 = arith.constant 0 : i32
    return %c0_i32, %c0_i32_0 : i32, i32
  }
  func.func @transform_1(%arg0: i32, %arg1: memref<32xi32, #tpu.memory_space<smem>>) -> (i32, i32) {
    %c0_i32 = arith.constant 0 : i32
    %c0_i32_0 = arith.constant 0 : i32
    return %arg0, %c0_i32 : i32, i32
  }
}

module attributes {stable_mosaic.version = 11 : i64} {
  func.func @_embedding_gather_kernel(%arg0: i32, %arg1: memref<32xi32, #tpu.memory_space<smem>>, %arg2: memref<50x32xf32, #tpu.memory_space<vmem>>, %arg3: memref<8x128xf32, #tpu.memory_space<vmem>>) attributes {dimension_semantics = [#tpu.dimension_semantics<parallel>], iteration_bounds = array<i64: 1>, scalar_prefetch = 1 : i64, scratch_operands = 0 : i64, tpu.core_type = #tpu.core_type<tc>, window_params = [{pipeline_mode = #tpu.pipeline_mode<synchronous>, transform_indices = @transform_0, window_bounds = array<i64: 50, 32>}, {transform_indices = @transform_1, window_bounds = array<i64: 8, 128>}]} {
    %c32_i32 = arith.constant 32 : i32
    %0 = arith.muli %arg0, %c32_i32 : i32
    %c0_i32 = arith.constant 0 : i32
    %c8_i32 = arith.constant 8 : i32
    %1 = arith.muli %c0_i32, %c8_i32 : i32
    %c0_i32_0 = arith.constant 0 : i32
    %2 = arith.addi %1, %c0_i32_0 : i32
    %c4_i32 = arith.constant 4 : i32
    %3 = arith.muli %2, %c4_i32 : i32
    %4 = arith.addi %0, %3 : i32
    %c0_i32_1 = arith.constant 0 : i32
    %5 = arith.addi %4, %c0_i32_1 : i32
    %6 = arith.index_cast %5 : i32 to index
    %7 = memref.load %arg1[%6] : memref<32xi32, #tpu.memory_space<smem>>
    %8 = arith.index_cast %7 : i32 to index
    %c0 = arith.constant 0 : index
    %9 = vector.load %arg2[%8, %c0] : memref<50x32xf32, #tpu.memory_space<vmem>>, vector<1x32xf32>
    %c1_i32 = arith.constant 1 : i32
    %10 = arith.addi %4, %c1_i32 : i32
    %11 = arith.index_cast %10 : i32 to index
    %12 = memref.load %arg1[%11] : memref<32xi32, #tpu.memory_space<smem>>
    %13 = arith.index_cast %12 : i32 to index
    %c0_2 = arith.constant 0 : index
    %14 = vector.load %arg2[%13, %c0_2] : memref<50x32xf32, #tpu.memory_space<vmem>>, vector<1x32xf32>
    %c2_i32 = arith.constant 2 : i32
    %15 = arith.addi %4, %c2_i32 : i32
    %16 = arith.index_cast %15 : i32 to index
    %17 = memref.load %arg1[%16] : memref<32xi32, #tpu.memory_space<smem>>
    %18 = arith.index_cast %17 : i32 to index
    %c0_3 = arith.constant 0 : index
    %19 = vector.load %arg2[%18, %c0_3] : memref<50x32xf32, #tpu.memory_space<vmem>>, vector<1x32xf32>
    %c3_i32 = arith.constant 3 : i32
    %20 = arith.addi %4, %c3_i32 : i32
    %21 = arith.index_cast %20 : i32 to index
    %22 = memref.load %arg1[%21] : memref<32xi32, #tpu.memory_space<smem>>
    %23 = arith.index_cast %22 : i32 to index
    %c0_4 = arith.constant 0 : index
    %24 = vector.load %arg2[%23, %c0_4] : memref<50x32xf32, #tpu.memory_space<vmem>>, vector<1x32xf32>
    %25 = tpu.concatenate %9, %14, %19, %24 in 1 : vector<1x32xf32>, vector<1x32xf32>, vector<1x32xf32>, vector<1x32xf32> -> vector<1x128xf32>
    %c8_i32_5 = arith.constant 8 : i32
    %26 = arith.muli %c0_i32, %c8_i32_5 : i32
    %c1_i32_6 = arith.constant 1 : i32
    %27 = arith.addi %26, %c1_i32_6 : i32
    %c4_i32_7 = arith.constant 4 : i32
    %28 = arith.muli %27, %c4_i32_7 : i32
    %29 = arith.addi %0, %28 : i32
    %c0_i32_8 = arith.constant 0 : i32
    %30 = arith.addi %29, %c0_i32_8 : i32
    %31 = arith.index_cast %30 : i32 to index
    %32 = memref.load %arg1[%31] : memref<32xi32, #tpu.memory_space<smem>>
    %33 = arith.index_cast %32 : i32 to index
    %c0_9 = arith.constant 0 : index
    %34 = vector.load %arg2[%33, %c0_9] : memref<50x32xf32, #tpu.memory_space<vmem>>, vector<1x32xf32>
    %c1_i32_10 = arith.constant 1 : i32
    %35 = arith.addi %29, %c1_i32_10 : i32
    %36 = arith.index_cast %35 : i32 to index
    %37 = memref.load %arg1[%36] : memref<32xi32, #tpu.memory_space<smem>>
    %38 = arith.index_cast %37 : i32 to index
    %c0_11 = arith.constant 0 : index
    %39 = vector.load %arg2[%38, %c0_11] : memref<50x32xf32, #tpu.memory_space<vmem>>, vector<1x32xf32>
    %c2_i32_12 = arith.constant 2 : i32
    %40 = arith.addi %29, %c2_i32_12 : i32
    %41 = arith.index_cast %40 : i32 to index
    %42 = memref.load %arg1[%41] : memref<32xi32, #tpu.memory_space<smem>>
    %43 = arith.index_cast %42 : i32 to index
    %c0_13 = arith.constant 0 : index
    %44 = vector.load %arg2[%43, %c0_13] : memref<50x32xf32, #tpu.memory_space<vmem>>, vector<1x32xf32>
    %c3_i32_14 = arith.constant 3 : i32
    %45 = arith.addi %29, %c3_i32_14 : i32
    %46 = arith.index_cast %45 : i32 to index
    %47 = memref.load %arg1[%46] : memref<32xi32, #tpu.memory_space<smem>>
    %48 = arith.index_cast %47 : i32 to index
    %c0_15 = arith.constant 0 : index
    %49 = vector.load %arg2[%48, %c0_15] : memref<50x32xf32, #tpu.memory_space<vmem>>, vector<1x32xf32>
    %50 = tpu.concatenate %34, %39, %44, %49 in 1 : vector<1x32xf32>, vector<1x32xf32>, vector<1x32xf32>, vector<1x32xf32> -> vector<1x128xf32>
    %c8_i32_16 = arith.constant 8 : i32
    %51 = arith.muli %c0_i32, %c8_i32_16 : i32
    %c2_i32_17 = arith.constant 2 : i32
    %52 = arith.addi %51, %c2_i32_17 : i32
    %c4_i32_18 = arith.constant 4 : i32
    %53 = arith.muli %52, %c4_i32_18 : i32
    %54 = arith.addi %0, %53 : i32
    %c0_i32_19 = arith.constant 0 : i32
    %55 = arith.addi %54, %c0_i32_19 : i32
    %56 = arith.index_cast %55 : i32 to index
    %57 = memref.load %arg1[%56] : memref<32xi32, #tpu.memory_space<smem>>
    %58 = arith.index_cast %57 : i32 to index
    %c0_20 = arith.constant 0 : index
    %59 = vector.load %arg2[%58, %c0_20] : memref<50x32xf32, #tpu.memory_space<vmem>>, vector<1x32xf32>
    %c1_i32_21 = arith.constant 1 : i32
    %60 = arith.addi %54, %c1_i32_21 : i32
    %61 = arith.index_cast %60 : i32 to index
    %62 = memref.load %arg1[%61] : memref<32xi32, #tpu.memory_space<smem>>
    %63 = arith.index_cast %62 : i32 to index
    %c0_22 = arith.constant 0 : index
    %64 = vector.load %arg2[%63, %c0_22] : memref<50x32xf32, #tpu.memory_space<vmem>>, vector<1x32xf32>
    %c2_i32_23 = arith.constant 2 : i32
    %65 = arith.addi %54, %c2_i32_23 : i32
    %66 = arith.index_cast %65 : i32 to index
    %67 = memref.load %arg1[%66] : memref<32xi32, #tpu.memory_space<smem>>
    %68 = arith.index_cast %67 : i32 to index
    %c0_24 = arith.constant 0 : index
    %69 = vector.load %arg2[%68, %c0_24] : memref<50x32xf32, #tpu.memory_space<vmem>>, vector<1x32xf32>
    %c3_i32_25 = arith.constant 3 : i32
    %70 = arith.addi %54, %c3_i32_25 : i32
    %71 = arith.index_cast %70 : i32 to index
    %72 = memref.load %arg1[%71] : memref<32xi32, #tpu.memory_space<smem>>
    %73 = arith.index_cast %72 : i32 to index
    %c0_26 = arith.constant 0 : index
    %74 = vector.load %arg2[%73, %c0_26] : memref<50x32xf32, #tpu.memory_space<vmem>>, vector<1x32xf32>
    %75 = tpu.concatenate %59, %64, %69, %74 in 1 : vector<1x32xf32>, vector<1x32xf32>, vector<1x32xf32>, vector<1x32xf32> -> vector<1x128xf32>
    %c8_i32_27 = arith.constant 8 : i32
    %76 = arith.muli %c0_i32, %c8_i32_27 : i32
    %c3_i32_28 = arith.constant 3 : i32
    %77 = arith.addi %76, %c3_i32_28 : i32
    %c4_i32_29 = arith.constant 4 : i32
    %78 = arith.muli %77, %c4_i32_29 : i32
    %79 = arith.addi %0, %78 : i32
    %c0_i32_30 = arith.constant 0 : i32
    %80 = arith.addi %79, %c0_i32_30 : i32
    %81 = arith.index_cast %80 : i32 to index
    %82 = memref.load %arg1[%81] : memref<32xi32, #tpu.memory_space<smem>>
    %83 = arith.index_cast %82 : i32 to index
    %c0_31 = arith.constant 0 : index
    %84 = vector.load %arg2[%83, %c0_31] : memref<50x32xf32, #tpu.memory_space<vmem>>, vector<1x32xf32>
    %c1_i32_32 = arith.constant 1 : i32
    %85 = arith.addi %79, %c1_i32_32 : i32
    %86 = arith.index_cast %85 : i32 to index
    %87 = memref.load %arg1[%86] : memref<32xi32, #tpu.memory_space<smem>>
    %88 = arith.index_cast %87 : i32 to index
    %c0_33 = arith.constant 0 : index
    %89 = vector.load %arg2[%88, %c0_33] : memref<50x32xf32, #tpu.memory_space<vmem>>, vector<1x32xf32>
    %c2_i32_34 = arith.constant 2 : i32
    %90 = arith.addi %79, %c2_i32_34 : i32
    %91 = arith.index_cast %90 : i32 to index
    %92 = memref.load %arg1[%91] : memref<32xi32, #tpu.memory_space<smem>>
    %93 = arith.index_cast %92 : i32 to index
    %c0_35 = arith.constant 0 : index
    %94 = vector.load %arg2[%93, %c0_35] : memref<50x32xf32, #tpu.memory_space<vmem>>, vector<1x32xf32>
    %c3_i32_36 = arith.constant 3 : i32
    %95 = arith.addi %79, %c3_i32_36 : i32
    %96 = arith.index_cast %95 : i32 to index
    %97 = memref.load %arg1[%96] : memref<32xi32, #tpu.memory_space<smem>>
    %98 = arith.index_cast %97 : i32 to index
    %c0_37 = arith.constant 0 : index
    %99 = vector.load %arg2[%98, %c0_37] : memref<50x32xf32, #tpu.memory_space<vmem>>, vector<1x32xf32>
    %100 = tpu.concatenate %84, %89, %94, %99 in 1 : vector<1x32xf32>, vector<1x32xf32>, vector<1x32xf32>, vector<1x32xf32> -> vector<1x128xf32>
    %c8_i32_38 = arith.constant 8 : i32
    %101 = arith.muli %c0_i32, %c8_i32_38 : i32
    %c4_i32_39 = arith.constant 4 : i32
    %102 = arith.addi %101, %c4_i32_39 : i32
    %c4_i32_40 = arith.constant 4 : i32
    %103 = arith.muli %102, %c4_i32_40 : i32
    %104 = arith.addi %0, %103 : i32
    %c0_i32_41 = arith.constant 0 : i32
    %105 = arith.addi %104, %c0_i32_41 : i32
    %106 = arith.index_cast %105 : i32 to index
    %107 = memref.load %arg1[%106] : memref<32xi32, #tpu.memory_space<smem>>
    %108 = arith.index_cast %107 : i32 to index
    %c0_42 = arith.constant 0 : index
    %109 = vector.load %arg2[%108, %c0_42] : memref<50x32xf32, #tpu.memory_space<vmem>>, vector<1x32xf32>
    %c1_i32_43 = arith.constant 1 : i32
    %110 = arith.addi %104, %c1_i32_43 : i32
    %111 = arith.index_cast %110 : i32 to index
    %112 = memref.load %arg1[%111] : memref<32xi32, #tpu.memory_space<smem>>
    %113 = arith.index_cast %112 : i32 to index
    %c0_44 = arith.constant 0 : index
    %114 = vector.load %arg2[%113, %c0_44] : memref<50x32xf32, #tpu.memory_space<vmem>>, vector<1x32xf32>
    %c2_i32_45 = arith.constant 2 : i32
    %115 = arith.addi %104, %c2_i32_45 : i32
    %116 = arith.index_cast %115 : i32 to index
    %117 = memref.load %arg1[%116] : memref<32xi32, #tpu.memory_space<smem>>
    %118 = arith.index_cast %117 : i32 to index
    %c0_46 = arith.constant 0 : index
    %119 = vector.load %arg2[%118, %c0_46] : memref<50x32xf32, #tpu.memory_space<vmem>>, vector<1x32xf32>
    %c3_i32_47 = arith.constant 3 : i32
    %120 = arith.addi %104, %c3_i32_47 : i32
    %121 = arith.index_cast %120 : i32 to index
    %122 = memref.load %arg1[%121] : memref<32xi32, #tpu.memory_space<smem>>
    %123 = arith.index_cast %122 : i32 to index
    %c0_48 = arith.constant 0 : index
    %124 = vector.load %arg2[%123, %c0_48] : memref<50x32xf32, #tpu.memory_space<vmem>>, vector<1x32xf32>
    %125 = tpu.concatenate %109, %114, %119, %124 in 1 : vector<1x32xf32>, vector<1x32xf32>, vector<1x32xf32>, vector<1x32xf32> -> vector<1x128xf32>
    %c8_i32_49 = arith.constant 8 : i32
    %126 = arith.muli %c0_i32, %c8_i32_49 : i32
    %c5_i32 = arith.constant 5 : i32
    %127 = arith.addi %126, %c5_i32 : i32
    %c4_i32_50 = arith.constant 4 : i32
    %128 = arith.muli %127, %c4_i32_50 : i32
    %129 = arith.addi %0, %128 : i32
    %c0_i32_51 = arith.constant 0 : i32
    %130 = arith.addi %129, %c0_i32_51 : i32
    %131 = arith.index_cast %130 : i32 to index
    %132 = memref.load %arg1[%131] : memref<32xi32, #tpu.memory_space<smem>>
    %133 = arith.index_cast %132 : i32 to index
    %c0_52 = arith.constant 0 : index
    %134 = vector.load %arg2[%133, %c0_52] : memref<50x32xf32, #tpu.memory_space<vmem>>, vector<1x32xf32>
    %c1_i32_53 = arith.constant 1 : i32
    %135 = arith.addi %129, %c1_i32_53 : i32
    %136 = arith.index_cast %135 : i32 to index
    %137 = memref.load %arg1[%136] : memref<32xi32, #tpu.memory_space<smem>>
    %138 = arith.index_cast %137 : i32 to index
    %c0_54 = arith.constant 0 : index
    %139 = vector.load %arg2[%138, %c0_54] : memref<50x32xf32, #tpu.memory_space<vmem>>, vector<1x32xf32>
    %c2_i32_55 = arith.constant 2 : i32
    %140 = arith.addi %129, %c2_i32_55 : i32
    %141 = arith.index_cast %140 : i32 to index
    %142 = memref.load %arg1[%141] : memref<32xi32, #tpu.memory_space<smem>>
    %143 = arith.index_cast %142 : i32 to index
    %c0_56 = arith.constant 0 : index
    %144 = vector.load %arg2[%143, %c0_56] : memref<50x32xf32, #tpu.memory_space<vmem>>, vector<1x32xf32>
    %c3_i32_57 = arith.constant 3 : i32
    %145 = arith.addi %129, %c3_i32_57 : i32
    %146 = arith.index_cast %145 : i32 to index
    %147 = memref.load %arg1[%146] : memref<32xi32, #tpu.memory_space<smem>>
    %148 = arith.index_cast %147 : i32 to index
    %c0_58 = arith.constant 0 : index
    %149 = vector.load %arg2[%148, %c0_58] : memref<50x32xf32, #tpu.memory_space<vmem>>, vector<1x32xf32>
    %150 = tpu.concatenate %134, %139, %144, %149 in 1 : vector<1x32xf32>, vector<1x32xf32>, vector<1x32xf32>, vector<1x32xf32> -> vector<1x128xf32>
    %c8_i32_59 = arith.constant 8 : i32
    %151 = arith.muli %c0_i32, %c8_i32_59 : i32
    %c6_i32 = arith.constant 6 : i32
    %152 = arith.addi %151, %c6_i32 : i32
    %c4_i32_60 = arith.constant 4 : i32
    %153 = arith.muli %152, %c4_i32_60 : i32
    %154 = arith.addi %0, %153 : i32
    %c0_i32_61 = arith.constant 0 : i32
    %155 = arith.addi %154, %c0_i32_61 : i32
    %156 = arith.index_cast %155 : i32 to index
    %157 = memref.load %arg1[%156] : memref<32xi32, #tpu.memory_space<smem>>
    %158 = arith.index_cast %157 : i32 to index
    %c0_62 = arith.constant 0 : index
    %159 = vector.load %arg2[%158, %c0_62] : memref<50x32xf32, #tpu.memory_space<vmem>>, vector<1x32xf32>
    %c1_i32_63 = arith.constant 1 : i32
    %160 = arith.addi %154, %c1_i32_63 : i32
    %161 = arith.index_cast %160 : i32 to index
    %162 = memref.load %arg1[%161] : memref<32xi32, #tpu.memory_space<smem>>
    %163 = arith.index_cast %162 : i32 to index
    %c0_64 = arith.constant 0 : index
    %164 = vector.load %arg2[%163, %c0_64] : memref<50x32xf32, #tpu.memory_space<vmem>>, vector<1x32xf32>
    %c2_i32_65 = arith.constant 2 : i32
    %165 = arith.addi %154, %c2_i32_65 : i32
    %166 = arith.index_cast %165 : i32 to index
    %167 = memref.load %arg1[%166] : memref<32xi32, #tpu.memory_space<smem>>
    %168 = arith.index_cast %167 : i32 to index
    %c0_66 = arith.constant 0 : index
    %169 = vector.load %arg2[%168, %c0_66] : memref<50x32xf32, #tpu.memory_space<vmem>>, vector<1x32xf32>
    %c3_i32_67 = arith.constant 3 : i32
    %170 = arith.addi %154, %c3_i32_67 : i32
    %171 = arith.index_cast %170 : i32 to index
    %172 = memref.load %arg1[%171] : memref<32xi32, #tpu.memory_space<smem>>
    %173 = arith.index_cast %172 : i32 to index
    %c0_68 = arith.constant 0 : index
    %174 = vector.load %arg2[%173, %c0_68] : memref<50x32xf32, #tpu.memory_space<vmem>>, vector<1x32xf32>
    %175 = tpu.concatenate %159, %164, %169, %174 in 1 : vector<1x32xf32>, vector<1x32xf32>, vector<1x32xf32>, vector<1x32xf32> -> vector<1x128xf32>
    %c8_i32_69 = arith.constant 8 : i32
    %176 = arith.muli %c0_i32, %c8_i32_69 : i32
    %c7_i32 = arith.constant 7 : i32
    %177 = arith.addi %176, %c7_i32 : i32
    %c4_i32_70 = arith.constant 4 : i32
    %178 = arith.muli %177, %c4_i32_70 : i32
    %179 = arith.addi %0, %178 : i32
    %c0_i32_71 = arith.constant 0 : i32
    %180 = arith.addi %179, %c0_i32_71 : i32
    %181 = arith.index_cast %180 : i32 to index
    %182 = memref.load %arg1[%181] : memref<32xi32, #tpu.memory_space<smem>>
    %183 = arith.index_cast %182 : i32 to index
    %c0_72 = arith.constant 0 : index
    %184 = vector.load %arg2[%183, %c0_72] : memref<50x32xf32, #tpu.memory_space<vmem>>, vector<1x32xf32>
    %c1_i32_73 = arith.constant 1 : i32
    %185 = arith.addi %179, %c1_i32_73 : i32
    %186 = arith.index_cast %185 : i32 to index
    %187 = memref.load %arg1[%186] : memref<32xi32, #tpu.memory_space<smem>>
    %188 = arith.index_cast %187 : i32 to index
    %c0_74 = arith.constant 0 : index
    %189 = vector.load %arg2[%188, %c0_74] : memref<50x32xf32, #tpu.memory_space<vmem>>, vector<1x32xf32>
    %c2_i32_75 = arith.constant 2 : i32
    %190 = arith.addi %179, %c2_i32_75 : i32
    %191 = arith.index_cast %190 : i32 to index
    %192 = memref.load %arg1[%191] : memref<32xi32, #tpu.memory_space<smem>>
    %193 = arith.index_cast %192 : i32 to index
    %c0_76 = arith.constant 0 : index
    %194 = vector.load %arg2[%193, %c0_76] : memref<50x32xf32, #tpu.memory_space<vmem>>, vector<1x32xf32>
    %c3_i32_77 = arith.constant 3 : i32
    %195 = arith.addi %179, %c3_i32_77 : i32
    %196 = arith.index_cast %195 : i32 to index
    %197 = memref.load %arg1[%196] : memref<32xi32, #tpu.memory_space<smem>>
    %198 = arith.index_cast %197 : i32 to index
    %c0_78 = arith.constant 0 : index
    %199 = vector.load %arg2[%198, %c0_78] : memref<50x32xf32, #tpu.memory_space<vmem>>, vector<1x32xf32>
    %200 = tpu.concatenate %184, %189, %194, %199 in 1 : vector<1x32xf32>, vector<1x32xf32>, vector<1x32xf32>, vector<1x32xf32> -> vector<1x128xf32>
    %201 = tpu.concatenate %25, %50, %75, %100, %125, %150, %175, %200 in 0 : vector<1x128xf32>, vector<1x128xf32>, vector<1x128xf32>, vector<1x128xf32>, vector<1x128xf32>, vector<1x128xf32>, vector<1x128xf32>, vector<1x128xf32> -> vector<8x128xf32>
    %c8_i32_79 = arith.constant 8 : i32
    %202 = arith.muli %c0_i32, %c8_i32_79 : i32
    %203 = tpu.assume_multiple %202, 8 : i32
    %cst = arith.constant 5.65685415 : f32
    %204 = vector.broadcast %cst : f32 to vector<8x128xf32>
    %205 = arith.mulf %201, %204 : vector<8x128xf32>
    %206 = arith.index_cast %203 : i32 to index
    %c0_80 = arith.constant 0 : index
    %207 = vector.load %arg3[%206, %c0_80] : memref<8x128xf32, #tpu.memory_space<vmem>>, vector<8x128xf32>
    tpu.vector_store %arg3[%206, %c0_80], %205 {strides = array<i32>} : memref<8x128xf32, #tpu.memory_space<vmem>>, vector<8x128xf32>,
    %c1_i32_81 = arith.constant 1 : i32
    return
  }
  func.func @transform_0(%arg0: i32, %arg1: memref<32xi32, #tpu.memory_space<smem>>) -> (i32, i32) {
    %c0_i32 = arith.constant 0 : i32
    %c0_i32_0 = arith.constant 0 : i32
    %c0_i32_1 = arith.constant 0 : i32
    return %c0_i32, %c0_i32_0 : i32, i32
  }
  func.func @transform_1(%arg0: i32, %arg1: memref<32xi32, #tpu.memory_space<smem>>) -> (i32, i32) {
    %c0_i32 = arith.constant 0 : i32
    %c0_i32_0 = arith.constant 0 : i32
    return %arg0, %c0_i32 : i32, i32
  }
}

</mosaic_0001>

<llo_original>
// kernel: tpu_custom_call.1
$region0: #{tpu_custom_call.1}
  #allocation0 [shape = 'u32[]', space=smem, size = 0x4, offset = 0x4, fixed_abs, tag = 'smem constant byte address 0x4 - core index']
  #allocation1 [shape = 'u32[72,128]{1,0:T(1,128)}', space=vmem, size = 0x9000, scoped, tag = 'internal scratch']
  #allocation2 [shape = 's32[1]{0}', space=sflag, size = 0x4, scoped, tag = 'scoped memory for tpu_custom_call.1']
  #allocation3 [shape = 'u8[512]{0}', space=smem, size = 0x200, scoped, tag = 'prefetched SMEM operand 0']
  %s0 = inlined_call_operand.vmem [shape: s32[32], index: 0, kind: input, shape index: {}]
  %s1 = inlined_call_operand.vmem [shape: f32[50,32], index: 1, kind: input, shape index: {}]
  %s2 = inlined_call_operand.hbm [shape: f32[8,128], index: 2, kind: output, shape index: {}]
  %s3 = sld [smem:[#allocation0]]
  $region14: #{tpu_custom_call.1} parent=0
    _
  %s5 = ssub.s32 1, %s3
  %s6 = scalar_select 0, %s5, %s3
  %s8 = sshll.u32 %s0, 4
  %s9 = int_to_ptr.vmem [resolvable:$true] %s8
  %11 = dma.vmem_to_smem %s9, 16, [#allocation3], [#allocation2]
  %13 = dma.done [#allocation2], 16
  %14 = sfence
  $region1: #{tpu_custom_call.1} parent=0
    #allocation4 [shape = 'u8[4096]{0}', space=vmem, size = 0x1000, scoped, tag = 'output window, operand 0, single buffered']
    #allocation5 [shape = 's32[1]{0}', space=sflag, size = 0x4, scoped, tag = 'scoped memory for tpu_custom_call.1']
    %15 = vsyncpa [#allocation5], 0
    // Predicated region
    $region2: #{tpu_custom_call.1} parent=1 // pred_check
      _
    $region3: #{tpu_custom_call.1} parent=1 // pred_check_branch
      %17 = sbr.rel (0) target = $region5
    $region4: #{tpu_custom_call.1} parent=1 // pred_region
      _
    $region5: #{tpu_custom_call.1} parent=1 // pred_fallthru
      _
    %s18 = smul.u32 0, 32
    %s19 = sld [smem:[#allocation3 + %s18]]
    %s20 = scalar_lea.vmem %s1, %s19
    %v21 = vld [vmem:[%s20] sm:$0x1]
    %s22 = sadd.s32 %s18, 1
    %s23 = sld [smem:[#allocation3 + %s22]]
    %s24 = scalar_lea.vmem %s1, %s23
    %v25 = vld [vmem:[%s24] sm:$0x1]
    %s26 = sadd.s32 %s18, 2
    %s27 = sld [smem:[#allocation3 + %s26]]
    %s28 = scalar_lea.vmem %s1, %s27
    %v29 = vld [vmem:[%s28] sm:$0x1]
    %s30 = sadd.s32 %s18, 3
    %s31 = sld [smem:[#allocation3 + %s30]]
    %s32 = scalar_lea.vmem %s1, %s31
    %v33 = vld [vmem:[%s32] sm:$0x1]
    %35 = vrot.lane.b32.xlu0 %v25, 32
    %v36 = vpop.permute.xlu0 %35
    %39 = vrot.lane.b32.xlu0 %v29, 64
    %v40 = vpop.permute.xlu0 %39
    %43 = vrot.lane.b32.xlu0 %v33, 96
    %v44 = vpop.permute.xlu0 %43
    %vm46 = vcmask 261120
    %v47 = vsel %vm46, %v21, %v36
    %vm48 = vcmask 523264
    %v49 = vsel %vm48, %v47, %v40
    %vm50 = vcmask 785408
    %v51 = vsel %vm50, %v49, %v44
    %s52 = sadd.s32 %s18, 4
    %s53 = sld [smem:[#allocation3 + %s52]]
    %s54 = scalar_lea.vmem %s1, %s53
    %v55 = vld [vmem:[%s54] sm:$0x1]
    %s56 = sadd.s32 %s18, 5
    %s57 = sld [smem:[#allocation3 + %s56]]
    %s58 = scalar_lea.vmem %s1, %s57
    %v59 = vld [vmem:[%s58] sm:$0x1]
    %s60 = sadd.s32 %s18, 6
    %s61 = sld [smem:[#allocation3 + %s60]]
    %s62 = scalar_lea.vmem %s1, %s61
    %v63 = vld [vmem:[%s62] sm:$0x1]
    %s64 = sadd.s32 %s18, 7
    %s65 = sld [smem:[#allocation3 + %s64]]
    %s66 = scalar_lea.vmem %s1, %s65
    %v67 = vld [vmem:[%s66] sm:$0x1]
    %69 = vrot.lane.b32.xlu0 %v59, 32
    %v70 = vpop.permute.xlu0 %69
    %73 = vrot.lane.b32.xlu0 %v63, 64
    %v74 = vpop.permute.xlu0 %73
    %77 = vrot.lane.b32.xlu0 %v67, 96
    %v78 = vpop.permute.xlu0 %77
    %v80 = vsel %vm46, %v55, %v70
    %v81 = vsel %vm48, %v80, %v74
    %v82 = vsel %vm50, %v81, %v78
    %s83 = sadd.s32 %s18, 8
    %s84 = sld [smem:[#allocation3 + %s83]]
    %s85 = scalar_lea.vmem %s1, %s84
    %v86 = vld [vmem:[%s85] sm:$0x1]
    %s87 = sadd.s32 %s18, 9
    %s88 = sld [smem:[#allocation3 + %s87]]
    %s89 = scalar_lea.vmem %s1, %s88
    %v90 = vld [vmem:[%s89] sm:$0x1]
    %s91 = sadd.s32 %s18, 10
    %s92 = sld [smem:[#allocation3 + %s91]]
    %s93 = scalar_lea.vmem %s1, %s92
    %v94 = vld [vmem:[%s93] sm:$0x1]
    %s95 = sadd.s32 %s18, 11
    %s96 = sld [smem:[#allocation3 + %s95]]
    %s97 = scalar_lea.vmem %s1, %s96
    %v98 = vld [vmem:[%s97] sm:$0x1]
    %100 = vrot.lane.b32.xlu0 %v90, 32
    %v101 = vpop.permute.xlu0 %100
    %104 = vrot.lane.b32.xlu0 %v94, 64
    %v105 = vpop.permute.xlu0 %104
    %108 = vrot.lane.b32.xlu0 %v98, 96
    %v109 = vpop.permute.xlu0 %108
    %v111 = vsel %vm46, %v86, %v101
    %v112 = vsel %vm48, %v111, %v105
    %v113 = vsel %vm50, %v112, %v109
    %s114 = sadd.s32 %s18, 12
    %s115 = sld [smem:[#allocation3 + %s114]]
    %s116 = scalar_lea.vmem %s1, %s115
    %v117 = vld [vmem:[%s116] sm:$0x1]
    %s118 = sadd.s32 %s18, 13
    %s119 = sld [smem:[#allocation3 + %s118]]
    %s120 = scalar_lea.vmem %s1, %s119
    %v121 = vld [vmem:[%s120] sm:$0x1]
    %s122 = sadd.s32 %s18, 14
    %s123 = sld [smem:[#allocation3 + %s122]]
    %s124 = scalar_lea.vmem %s1, %s123
    %v125 = vld [vmem:[%s124] sm:$0x1]
    %s126 = sadd.s32 %s18, 15
    %s127 = sld [smem:[#allocation3 + %s126]]
    %s128 = scalar_lea.vmem %s1, %s127
    %v129 = vld [vmem:[%s128] sm:$0x1]
    %131 = vrot.lane.b32.xlu0 %v121, 32
    %v132 = vpop.permute.xlu0 %131
    %135 = vrot.lane.b32.xlu0 %v125, 64
    %v136 = vpop.permute.xlu0 %135
    %139 = vrot.lane.b32.xlu0 %v129, 96
    %v140 = vpop.permute.xlu0 %139
    %v142 = vsel %vm46, %v117, %v132
    %v143 = vsel %vm48, %v142, %v136
    %v144 = vsel %vm50, %v143, %v140
    %s145 = sadd.s32 %s18, 16
    %s146 = sld [smem:[#allocation3 + %s145]]
    %s147 = scalar_lea.vmem %s1, %s146
    %v148 = vld [vmem:[%s147] sm:$0x1]
    %s149 = sadd.s32 %s18, 17
    %s150 = sld [smem:[#allocation3 + %s149]]
    %s151 = scalar_lea.vmem %s1, %s150
    %v152 = vld [vmem:[%s151] sm:$0x1]
    %s153 = sadd.s32 %s18, 18
    %s154 = sld [smem:[#allocation3 + %s153]]
    %s155 = scalar_lea.vmem %s1, %s154
    %v156 = vld [vmem:[%s155] sm:$0x1]
    %s157 = sadd.s32 %s18, 19
    %s158 = sld [smem:[#allocation3 + %s157]]
    %s159 = scalar_lea.vmem %s1, %s158
    %v160 = vld [vmem:[%s159] sm:$0x1]
    %162 = vrot.lane.b32.xlu0 %v152, 32
    %v163 = vpop.permute.xlu0 %162
    %166 = vrot.lane.b32.xlu0 %v156, 64
    %v167 = vpop.permute.xlu0 %166
    %170 = vrot.lane.b32.xlu0 %v160, 96
    %v171 = vpop.permute.xlu0 %170
    %v173 = vsel %vm46, %v148, %v163
    %v174 = vsel %vm48, %v173, %v167
    %v175 = vsel %vm50, %v174, %v171
    %s176 = sadd.s32 %s18, 20
    %s177 = sld [smem:[#allocation3 + %s176]]
    %s178 = scalar_lea.vmem %s1, %s177
    %v179 = vld [vmem:[%s178] sm:$0x1]
    %s180 = sadd.s32 %s18, 21
    %s181 = sld [smem:[#allocation3 + %s180]]
    %s182 = scalar_lea.vmem %s1, %s181
    %v183 = vld [vmem:[%s182] sm:$0x1]
    %s184 = sadd.s32 %s18, 22
    %s185 = sld [smem:[#allocation3 + %s184]]
    %s186 = scalar_lea.vmem %s1, %s185
    %v187 = vld [vmem:[%s186] sm:$0x1]
    %s188 = sadd.s32 %s18, 23
    %s189 = sld [smem:[#allocation3 + %s188]]
    %s190 = scalar_lea.vmem %s1, %s189
    %v191 = vld [vmem:[%s190] sm:$0x1]
    %193 = vrot.lane.b32.xlu0 %v183, 32
    %v194 = vpop.permute.xlu0 %193
    %197 = vrot.lane.b32.xlu0 %v187, 64
    %v198 = vpop.permute.xlu0 %197
    %201 = vrot.lane.b32.xlu0 %v191, 96
    %v202 = vpop.permute.xlu0 %201
    %v204 = vsel %vm46, %v179, %v194
    %v205 = vsel %vm48, %v204, %v198
    %v206 = vsel %vm50, %v205, %v202
    %s207 = sadd.s32 %s18, 24
    %s208 = sld [smem:[#allocation3 + %s207]]
    %s209 = scalar_lea.vmem %s1, %s208
    %v210 = vld [vmem:[%s209] sm:$0x1]
    %s211 = sadd.s32 %s18, 25
    %s212 = sld [smem:[#allocation3 + %s211]]
    %s213 = scalar_lea.vmem %s1, %s212
    %v214 = vld [vmem:[%s213] sm:$0x1]
    %s215 = sadd.s32 %s18, 26
    %s216 = sld [smem:[#allocation3 + %s215]]
    %s217 = scalar_lea.vmem %s1, %s216
    %v218 = vld [vmem:[%s217] sm:$0x1]
    %s219 = sadd.s32 %s18, 27
    %s220 = sld [smem:[#allocation3 + %s219]]
    %s221 = scalar_lea.vmem %s1, %s220
    %v222 = vld [vmem:[%s221] sm:$0x1]
    %224 = vrot.lane.b32.xlu0 %v214, 32
    %v225 = vpop.permute.xlu0 %224
    %228 = vrot.lane.b32.xlu0 %v218, 64
    %v229 = vpop.permute.xlu0 %228
    %232 = vrot.lane.b32.xlu0 %v222, 96
    %v233 = vpop.permute.xlu0 %232
    %v235 = vsel %vm46, %v210, %v225
    %v236 = vsel %vm48, %v235, %v229
    %v237 = vsel %vm50, %v236, %v233
    %s238 = sadd.s32 %s18, 28
    %s239 = sld [smem:[#allocation3 + %s238]]
    %s240 = scalar_lea.vmem %s1, %s239
    %v241 = vld [vmem:[%s240] sm:$0x1]
    %s242 = sadd.s32 %s18, 29
    %s243 = sld [smem:[#allocation3 + %s242]]
    %s244 = scalar_lea.vmem %s1, %s243
    %v245 = vld [vmem:[%s244] sm:$0x1]
    %s246 = sadd.s32 %s18, 30
    %s247 = sld [smem:[#allocation3 + %s246]]
    %s248 = scalar_lea.vmem %s1, %s247
    %v249 = vld [vmem:[%s248] sm:$0x1]
    %s250 = sadd.s32 %s18, 31
    %s251 = sld [smem:[#allocation3 + %s250]]
    %s252 = scalar_lea.vmem %s1, %s251
    %v253 = vld [vmem:[%s252] sm:$0x1]
    %255 = vrot.lane.b32.xlu0 %v245, 32
    %v256 = vpop.permute.xlu0 %255
    %259 = vrot.lane.b32.xlu0 %v249, 64
    %v260 = vpop.permute.xlu0 %259
    %263 = vrot.lane.b32.xlu0 %v253, 96
    %v264 = vpop.permute.xlu0 %263
    %v266 = vsel %vm46, %v241, %v256
    %v267 = vsel %vm48, %v266, %v260
    %v268 = vsel %vm50, %v267, %v264
    %v270 = vrot.slane %v82, 7
    %v273 = vrot.slane %v113, 6
    %v276 = vrot.slane %v144, 5
    %v279 = vrot.slane %v175, 4
    %v282 = vrot.slane %v206, 3
    %v285 = vrot.slane %v237, 2
    %v288 = vrot.slane %v268, 1
    %vm290 = vcmask 1040384
    %v291 = vsel %vm290, %v51, %v270
    %vm292 = vcmask 1041408
    %v293 = vsel %vm292, %v291, %v273
    %vm294 = vcmask 1042432
    %v295 = vsel %vm294, %v293, %v276
    %vm296 = vcmask 1043456
    %v297 = vsel %vm296, %v295, %v279
    %vm298 = vcmask 1044480
    %v299 = vsel %vm298, %v297, %v282
    %vm300 = vcmask 1045504
    %v301 = vsel %vm300, %v299, %v285
    %vm302 = vcmask 1046528
    %v303 = vsel %vm302, %v301, %v288
    %v304 = vmul.f32 %v303, 5.656854
    %305 = vst [vmem:[#allocation4] sm:$0xff] %v304
    // Predicated region
    $region6: #{tpu_custom_call.1} parent=1 // pred_check
      _
    $region7: #{tpu_custom_call.1} parent=1 // pred_check_branch
      %307 = sbr.rel (0) target = $region9
    $region8: #{tpu_custom_call.1} parent=1 // pred_region
      %309 = vsyncadd [#allocation5], 0
      %s311 = sshll.u32 [#allocation4], 4
      %s312 = int_to_ptr.vmem [resolvable:$true] %s311
      %s313 = sshll.u32 %s2, 4
      %s314 = int_to_ptr.hbm [resolvable:$true] %s313
      %316 = dma.vmem_to_hbm [thread:$0]  %s312, 128, %s314, [#allocation5]
    $region9: #{tpu_custom_call.1} parent=1 // pred_fallthru
      _
    // Predicated region
    $region10: #{tpu_custom_call.1} parent=1 // pred_check
      _
    $region11: #{tpu_custom_call.1} parent=1 // pred_check_branch
      %318 = sbr.rel (0) target = $region13
    $region12: #{tpu_custom_call.1} parent=1 // pred_region
      %320 = dma.done [#allocation5], 128
    $region13: #{tpu_custom_call.1} parent=1 // pred_fallthru
      _
    %321 = vsyncpa [#allocation5], 1

// kernel: tpu_custom_call.1
$region0: #{tpu_custom_call.1}
  #allocation0 [shape = 'u32[]', space=smem, size = 0x4, offset = 0x4, fixed_abs, tag = 'smem constant byte address 0x4 - core index']
  #allocation1 [shape = 'u32[72,128]{1,0:T(1,128)}', space=vmem, size = 0x9000, scoped, tag = 'internal scratch']
  #allocation2 [shape = 's32[1]{0}', space=sflag, size = 0x4, scoped, tag = 'scoped memory for tpu_custom_call.1']
  #allocation3 [shape = 'u8[512]{0}', space=smem, size = 0x200, scoped, tag = 'prefetched SMEM operand 0']
  %s0 = inlined_call_operand.vmem [shape: s32[32], index: 0, kind: input, shape index: {}]
  %s1 = inlined_call_operand.vmem [shape: f32[50,32], index: 1, kind: input, shape index: {}]
  %s2 = inlined_call_operand.hbm [shape: f32[8,128], index: 2, kind: output, shape index: {}]
  %s3 = sld [smem:[#allocation0]]
  $region14: #{tpu_custom_call.1} parent=0
    _
  %s5 = ssub.s32 1, %s3
  %s6 = scalar_select 0, %s5, %s3
  %s8 = sshll.u32 %s0, 4
  %s9 = int_to_ptr.vmem [resolvable:$true] %s8
  %11 = dma.vmem_to_smem %s9, 16, [#allocation3], [#allocation2]
  %13 = dma.done [#allocation2], 16
  %14 = sfence
  $region1: #{tpu_custom_call.1} parent=0
    #allocation4 [shape = 'u8[4096]{0}', space=vmem, size = 0x1000, scoped, tag = 'output window, operand 0, single buffered']
    #allocation5 [shape = 's32[1]{0}', space=sflag, size = 0x4, scoped, tag = 'scoped memory for tpu_custom_call.1']
    %15 = vsyncpa [#allocation5], 0
    // Predicated region
    $region2: #{tpu_custom_call.1} parent=1 // pred_check
      _
    $region3: #{tpu_custom_call.1} parent=1 // pred_check_branch
      %17 = sbr.rel (0) target = $region5
    $region4: #{tpu_custom_call.1} parent=1 // pred_region
      _
    $region5: #{tpu_custom_call.1} parent=1 // pred_fallthru
      _
    %s18 = smul.u32 0, 32
    %s19 = sld [smem:[#allocation3 + %s18]]
    %s20 = scalar_lea.vmem %s1, %s19
    %v21 = vld [vmem:[%s20] sm:$0x1]
    %s22 = sadd.s32 %s18, 1
    %s23 = sld [smem:[#allocation3 + %s22]]
    %s24 = scalar_lea.vmem %s1, %s23
    %v25 = vld [vmem:[%s24] sm:$0x1]
    %s26 = sadd.s32 %s18, 2
    %s27 = sld [smem:[#allocation3 + %s26]]
    %s28 = scalar_lea.vmem %s1, %s27
    %v29 = vld [vmem:[%s28] sm:$0x1]
    %s30 = sadd.s32 %s18, 3
    %s31 = sld [smem:[#allocation3 + %s30]]
    %s32 = scalar_lea.vmem %s1, %s31
    %v33 = vld [vmem:[%s32] sm:$0x1]
    %35 = vrot.lane.b32.xlu0 %v25, 32
    %v36 = vpop.permute.xlu0 %35
    %39 = vrot.lane.b32.xlu0 %v29, 64
    %v40 = vpop.permute.xlu0 %39
    %43 = vrot.lane.b32.xlu0 %v33, 96
    %v44 = vpop.permute.xlu0 %43
    %vm46 = vcmask 261120
    %v47 = vsel %vm46, %v21, %v36
    %vm48 = vcmask 523264
    %v49 = vsel %vm48, %v47, %v40
    %vm50 = vcmask 785408
    %v51 = vsel %vm50, %v49, %v44
    %s52 = sadd.s32 %s18, 4
    %s53 = sld [smem:[#allocation3 + %s52]]
    %s54 = scalar_lea.vmem %s1, %s53
    %v55 = vld [vmem:[%s54] sm:$0x1]
    %s56 = sadd.s32 %s18, 5
    %s57 = sld [smem:[#allocation3 + %s56]]
    %s58 = scalar_lea.vmem %s1, %s57
    %v59 = vld [vmem:[%s58] sm:$0x1]
    %s60 = sadd.s32 %s18, 6
    %s61 = sld [smem:[#allocation3 + %s60]]
    %s62 = scalar_lea.vmem %s1, %s61
    %v63 = vld [vmem:[%s62] sm:$0x1]
    %s64 = sadd.s32 %s18, 7
    %s65 = sld [smem:[#allocation3 + %s64]]
    %s66 = scalar_lea.vmem %s1, %s65
    %v67 = vld [vmem:[%s66] sm:$0x1]
    %69 = vrot.lane.b32.xlu0 %v59, 32
    %v70 = vpop.permute.xlu0 %69
    %73 = vrot.lane.b32.xlu0 %v63, 64
    %v74 = vpop.permute.xlu0 %73
    %77 = vrot.lane.b32.xlu0 %v67, 96
    %v78 = vpop.permute.xlu0 %77
    %v80 = vsel %vm46, %v55, %v70
    %v81 = vsel %vm48, %v80, %v74
    %v82 = vsel %vm50, %v81, %v78
    %s83 = sadd.s32 %s18, 8
    %s84 = sld [smem:[#allocation3 + %s83]]
    %s85 = scalar_lea.vmem %s1, %s84
    %v86 = vld [vmem:[%s85] sm:$0x1]
    %s87 = sadd.s32 %s18, 9
    %s88 = sld [smem:[#allocation3 + %s87]]
    %s89 = scalar_lea.vmem %s1, %s88
    %v90 = vld [vmem:[%s89] sm:$0x1]
    %s91 = sadd.s32 %s18, 10
    %s92 = sld [smem:[#allocation3 + %s91]]
    %s93 = scalar_lea.vmem %s1, %s92
    %v94 = vld [vmem:[%s93] sm:$0x1]
    %s95 = sadd.s32 %s18, 11
    %s96 = sld [smem:[#allocation3 + %s95]]
    %s97 = scalar_lea.vmem %s1, %s96
    %v98 = vld [vmem:[%s97] sm:$0x1]
    %100 = vrot.lane.b32.xlu0 %v90, 32
    %v101 = vpop.permute.xlu0 %100
    %104 = vrot.lane.b32.xlu0 %v94, 64
    %v105 = vpop.permute.xlu0 %104
    %108 = vrot.lane.b32.xlu0 %v98, 96
    %v109 = vpop.permute.xlu0 %108
    %v111 = vsel %vm46, %v86, %v101
    %v112 = vsel %vm48, %v111, %v105
    %v113 = vsel %vm50, %v112, %v109
    %s114 = sadd.s32 %s18, 12
    %s115 = sld [smem:[#allocation3 + %s114]]
    %s116 = scalar_lea.vmem %s1, %s115
    %v117 = vld [vmem:[%s116] sm:$0x1]
    %s118 = sadd.s32 %s18, 13
    %s119 = sld [smem:[#allocation3 + %s118]]
    %s120 = scalar_lea.vmem %s1, %s119
    %v121 = vld [vmem:[%s120] sm:$0x1]
    %s122 = sadd.s32 %s18, 14
    %s123 = sld [smem:[#allocation3 + %s122]]
    %s124 = scalar_lea.vmem %s1, %s123
    %v125 = vld [vmem:[%s124] sm:$0x1]
    %s126 = sadd.s32 %s18, 15
    %s127 = sld [smem:[#allocation3 + %s126]]
    %s128 = scalar_lea.vmem %s1, %s127
    %v129 = vld [vmem:[%s128] sm:$0x1]
    %131 = vrot.lane.b32.xlu0 %v121, 32
    %v132 = vpop.permute.xlu0 %131
    %135 = vrot.lane.b32.xlu0 %v125, 64
    %v136 = vpop.permute.xlu0 %135
    %139 = vrot.lane.b32.xlu0 %v129, 96
    %v140 = vpop.permute.xlu0 %139
    %v142 = vsel %vm46, %v117, %v132
    %v143 = vsel %vm48, %v142, %v136
    %v144 = vsel %vm50, %v143, %v140
    %s145 = sadd.s32 %s18, 16
    %s146 = sld [smem:[#allocation3 + %s145]]
    %s147 = scalar_lea.vmem %s1, %s146
    %v148 = vld [vmem:[%s147] sm:$0x1]
    %s149 = sadd.s32 %s18, 17
    %s150 = sld [smem:[#allocation3 + %s149]]
    %s151 = scalar_lea.vmem %s1, %s150
    %v152 = vld [vmem:[%s151] sm:$0x1]
    %s153 = sadd.s32 %s18, 18
    %s154 = sld [smem:[#allocation3 + %s153]]
    %s155 = scalar_lea.vmem %s1, %s154
    %v156 = vld [vmem:[%s155] sm:$0x1]
    %s157 = sadd.s32 %s18, 19
    %s158 = sld [smem:[#allocation3 + %s157]]
    %s159 = scalar_lea.vmem %s1, %s158
    %v160 = vld [vmem:[%s159] sm:$0x1]
    %162 = vrot.lane.b32.xlu0 %v152, 32
    %v163 = vpop.permute.xlu0 %162
    %166 = vrot.lane.b32.xlu0 %v156, 64
    %v167 = vpop.permute.xlu0 %166
    %170 = vrot.lane.b32.xlu0 %v160, 96
    %v171 = vpop.permute.xlu0 %170
    %v173 = vsel %vm46, %v148, %v163
    %v174 = vsel %vm48, %v173, %v167
    %v175 = vsel %vm50, %v174, %v171
    %s176 = sadd.s32 %s18, 20
    %s177 = sld [smem:[#allocation3 + %s176]]
    %s178 = scalar_lea.vmem %s1, %s177
    %v179 = vld [vmem:[%s178] sm:$0x1]
    %s180 = sadd.s32 %s18, 21
    %s181 = sld [smem:[#allocation3 + %s180]]
    %s182 = scalar_lea.vmem %s1, %s181
    %v183 = vld [vmem:[%s182] sm:$0x1]
    %s184 = sadd.s32 %s18, 22
    %s185 = sld [smem:[#allocation3 + %s184]]
    %s186 = scalar_lea.vmem %s1, %s185
    %v187 = vld [vmem:[%s186] sm:$0x1]
    %s188 = sadd.s32 %s18, 23
    %s189 = sld [smem:[#allocation3 + %s188]]
    %s190 = scalar_lea.vmem %s1, %s189
    %v191 = vld [vmem:[%s190] sm:$0x1]
    %193 = vrot.lane.b32.xlu0 %v183, 32
    %v194 = vpop.permute.xlu0 %193
    %197 = vrot.lane.b32.xlu0 %v187, 64
    %v198 = vpop.permute.xlu0 %197
    %201 = vrot.lane.b32.xlu0 %v191, 96
    %v202 = vpop.permute.xlu0 %201
    %v204 = vsel %vm46, %v179, %v194
    %v205 = vsel %vm48, %v204, %v198
    %v206 = vsel %vm50, %v205, %v202
    %s207 = sadd.s32 %s18, 24
    %s208 = sld [smem:[#allocation3 + %s207]]
    %s209 = scalar_lea.vmem %s1, %s208
    %v210 = vld [vmem:[%s209] sm:$0x1]
    %s211 = sadd.s32 %s18, 25
    %s212 = sld [smem:[#allocation3 + %s211]]
    %s213 = scalar_lea.vmem %s1, %s212
    %v214 = vld [vmem:[%s213] sm:$0x1]
    %s215 = sadd.s32 %s18, 26
    %s216 = sld [smem:[#allocation3 + %s215]]
    %s217 = scalar_lea.vmem %s1, %s216
    %v218 = vld [vmem:[%s217] sm:$0x1]
    %s219 = sadd.s32 %s18, 27
    %s220 = sld [smem:[#allocation3 + %s219]]
    %s221 = scalar_lea.vmem %s1, %s220
    %v222 = vld [vmem:[%s221] sm:$0x1]
    %224 = vrot.lane.b32.xlu0 %v214, 32
    %v225 = vpop.permute.xlu0 %224
    %228 = vrot.lane.b32.xlu0 %v218, 64
    %v229 = vpop.permute.xlu0 %228
    %232 = vrot.lane.b32.xlu0 %v222, 96
    %v233 = vpop.permute.xlu0 %232
    %v235 = vsel %vm46, %v210, %v225
    %v236 = vsel %vm48, %v235, %v229
    %v237 = vsel %vm50, %v236, %v233
    %s238 = sadd.s32 %s18, 28
    %s239 = sld [smem:[#allocation3 + %s238]]
    %s240 = scalar_lea.vmem %s1, %s239
    %v241 = vld [vmem:[%s240] sm:$0x1]
    %s242 = sadd.s32 %s18, 29
    %s243 = sld [smem:[#allocation3 + %s242]]
    %s244 = scalar_lea.vmem %s1, %s243
    %v245 = vld [vmem:[%s244] sm:$0x1]
    %s246 = sadd.s32 %s18, 30
    %s247 = sld [smem:[#allocation3 + %s246]]
    %s248 = scalar_lea.vmem %s1, %s247
    %v249 = vld [vmem:[%s248] sm:$0x1]
    %s250 = sadd.s32 %s18, 31
    %s251 = sld [smem:[#allocation3 + %s250]]
    %s252 = scalar_lea.vmem %s1, %s251
    %v253 = vld [vmem:[%s252] sm:$0x1]
    %255 = vrot.lane.b32.xlu0 %v245, 32
    %v256 = vpop.permute.xlu0 %255
    %259 = vrot.lane.b32.xlu0 %v249, 64
    %v260 = vpop.permute.xlu0 %259
    %263 = vrot.lane.b32.xlu0 %v253, 96
    %v264 = vpop.permute.xlu0 %263
    %v266 = vsel %vm46, %v241, %v256
    %v267 = vsel %vm48, %v266, %v260
    %v268 = vsel %vm50, %v267, %v264
    %v270 = vrot.slane %v82, 7
    %v273 = vrot.slane %v113, 6
    %v276 = vrot.slane %v144, 5
    %v279 = vrot.slane %v175, 4
    %v282 = vrot.slane %v206, 3
    %v285 = vrot.slane %v237, 2
    %v288 = vrot.slane %v268, 1
    %vm290 = vcmask 1040384
    %v291 = vsel %vm290, %v51, %v270
    %vm292 = vcmask 1041408
    %v293 = vsel %vm292, %v291, %v273
    %vm294 = vcmask 1042432
    %v295 = vsel %vm294, %v293, %v276
    %vm296 = vcmask 1043456
    %v297 = vsel %vm296, %v295, %v279
    %vm298 = vcmask 1044480
    %v299 = vsel %vm298, %v297, %v282
    %vm300 = vcmask 1045504
    %v301 = vsel %vm300, %v299, %v285
    %vm302 = vcmask 1046528
    %v303 = vsel %vm302, %v301, %v288
    %v304 = vmul.f32 %v303, 5.656854
    %305 = vst [vmem:[#allocation4] sm:$0xff] %v304
    // Predicated region
    $region6: #{tpu_custom_call.1} parent=1 // pred_check
      _
    $region7: #{tpu_custom_call.1} parent=1 // pred_check_branch
      %307 = sbr.rel (0) target = $region9
    $region8: #{tpu_custom_call.1} parent=1 // pred_region
      %309 = vsyncadd [#allocation5], 0
      %s311 = sshll.u32 [#allocation4], 4
      %s312 = int_to_ptr.vmem [resolvable:$true] %s311
      %s313 = sshll.u32 %s2, 4
      %s314 = int_to_ptr.hbm [resolvable:$true] %s313
      %316 = dma.vmem_to_hbm [thread:$0]  %s312, 128, %s314, [#allocation5]
    $region9: #{tpu_custom_call.1} parent=1 // pred_fallthru
      _
    // Predicated region
    $region10: #{tpu_custom_call.1} parent=1 // pred_check
      _
    $region11: #{tpu_custom_call.1} parent=1 // pred_check_branch
      %318 = sbr.rel (0) target = $region13
    $region12: #{tpu_custom_call.1} parent=1 // pred_region
      %320 = dma.done [#allocation5], 128
    $region13: #{tpu_custom_call.1} parent=1 // pred_fallthru
      _
    %321 = vsyncpa [#allocation5], 1

</llo_original>
